<compile_context>
chip_gen: v7x
topology: tpu7x:2x2x1
jax: 0.10.0
libtpu: 0.0.40
codegen_flags: <defaults>
</compile_context>

<pallas_src>
import jax
import jax.numpy as jnp
from jax.experimental import pallas as pl
from jax.experimental.pallas import tpu as pltpu

_LANE = 128  # TPU vreg lane width; pad d_out to a multiple of this.


def _linear_kernel(x_ref, w_ref, b_ref, o_ref):
    # x_ref: (tm, d_in)  w_ref: (d_in, d_pad)  b_ref: (1, d_pad)  o_ref: (tm, d_pad)
    acc = jnp.dot(x_ref[...], w_ref[...], preferred_element_type=jnp.float32)
    o_ref[...] = (acc + b_ref[...]).astype(o_ref.dtype)


def prepare_pilot_params(weight, bias):
    """One-time parameter prep (call at model init, NOT per forward).

    Takes PyTorch-layout weight (d_out, d_in) and bias (d_out,), returns a
    pre-transposed, lane-padded weight (d_in, d_pad) and bias (1, d_pad) with
    d_pad = round_up(d_out, 128), plus the true d_out for the final slice.
    """
    d_out, d_in = weight.shape
    d_pad = max(_LANE, ((d_out + _LANE - 1) // _LANE) * _LANE)
    w_t = jnp.zeros((d_in, d_pad), weight.dtype).at[:, :d_out].set(weight.T)
    b2d = jnp.zeros((1, d_pad), bias.dtype).at[0, :d_out].set(bias)
    return w_t, b2d, d_out


def _pilot_forward_small(x, w_t, b2d):
    """No grid, no pipeline: single kernel invocation, everything in VMEM."""
    B, _ = x.shape
    d_pad = w_t.shape[1]
    return pl.pallas_call(
        _linear_kernel,
        out_shape=jax.ShapeDtypeStruct((B, d_pad), x.dtype),
        in_specs=[
            pl.BlockSpec(memory_space=pltpu.MemorySpace.VMEM),
            pl.BlockSpec(memory_space=pltpu.MemorySpace.VMEM),
            pl.BlockSpec(memory_space=pltpu.MemorySpace.VMEM),
        ],
        out_specs=pl.BlockSpec(memory_space=pltpu.MemorySpace.VMEM),
    )(x, w_t, b2d)


def _pilot_forward_tiled(x, w_t, b2d, tm):
    """Large-batch path: tile over B, 'parallel' so v7x uses both TensorCores.

    Per-iteration VMEM (double-buffered x + out tiles plus resident w/b) is
    well under 1 MiB at tm=256, so the default scoped VMEM limit is plenty on
    v5e/v6e/v7x; raise vmem_limit_bytes only if tm is scaled up a lot.
    """
    B, d_in = x.shape
    d_pad = w_t.shape[1]
    return pl.pallas_call(
        _linear_kernel,
        out_shape=jax.ShapeDtypeStruct((B, d_pad), x.dtype),
        grid_spec=pltpu.PrefetchScalarGridSpec(
            num_scalar_prefetch=0,
            grid=(pl.cdiv(B, tm),),
            in_specs=[
                pl.BlockSpec((tm, d_in), lambda i: (i, 0)),
                pl.BlockSpec((d_in, d_pad), lambda i: (0, 0)),
                pl.BlockSpec((1, d_pad), lambda i: (0, 0)),
            ],
            out_specs=pl.BlockSpec((tm, d_pad), lambda i: (i, 0)),
        ),
        compiler_params=pltpu.CompilerParams(
            dimension_semantics=("parallel",)),
    )(x, w_t, b2d)


def pilot_forward(x, w_t, b2d, d_out, *, tile_m=256):
    """Pallas equivalent of nn.Linear(input_dim, target_dim)(x).

    Args:
      x:     (B, input_dim) float32
      w_t:   (input_dim, d_pad) pre-transposed, lane-padded weight
      b2d:   (1, d_pad) lane-padded bias
      d_out: true output width (target_dim)
    Returns:
      (B, d_out) float32
    """
    B = x.shape[0]
    if B <= tile_m:
        out = _pilot_forward_small(x, w_t, b2d)
    else:
        out = _pilot_forward_tiled(x, w_t, b2d, tile_m)
    if out.shape[1] != d_out:
        out = out[:, :d_out]
    return out


def pilot_reference(x, weight, bias):
    return x @ weight.T + bias


if __name__ == "__main__":
    key = jax.random.PRNGKey(0)
    k_x, k_w, k_b, k_xl = jax.random.split(key, 4)

    input_dim, target_dim, batch = 20, 64, 8

    # Deterministic parameter init, mimicking PyTorch's default Linear init:
    # U(-1/sqrt(fan_in), 1/sqrt(fan_in)) for both weight and bias.
    bound = 1.0 / jnp.sqrt(jnp.float32(input_dim))
    weight = jax.random.uniform(
        k_w, (target_dim, input_dim), jnp.float32, -bound, bound)
    bias = jax.random.uniform(
        k_b, (target_dim,), jnp.float32, -bound, bound)

    # One-time param prep (transpose + lane padding), hoisted out of forward.
    w_t, b2d, d_out = prepare_pilot_params(weight, bias)

    # Small-batch (no-grid) path.
    x = jax.random.normal(k_x, (batch, input_dim), jnp.float32)
    out = jax.block_until_ready(pilot_forward(x, w_t, b2d, d_out))
    ref = pilot_reference(x, weight, bias)
    assert out.shape == (batch, target_dim)
    assert jnp.allclose(out, ref, atol=1e-5, rtol=1e-5), "small-path mismatch"

    # Large-batch (tiled, 'parallel' over B) path, including a non-multiple
    # batch to exercise the partial last tile.
    big_batch = 1000
    x_big = jax.random.normal(k_xl, (big_batch, input_dim), jnp.float32)
    out_big = jax.block_until_ready(
        pilot_forward(x_big, w_t, b2d, d_out, tile_m=256))
    ref_big = pilot_reference(x_big, weight, bias)
    assert out_big.shape == (big_batch, target_dim)
    assert jnp.allclose(out_big, ref_big, atol=1e-5, rtol=1e-5), \
        "tiled-path mismatch"

    print("KERNEL_OK")
</pallas_src>

<mosaic_0001>
module attributes {stable_mosaic.version = 11 : i64} {
  func.func @_linear_kernel(%arg0: memref<8x20xf32, #tpu.memory_space<vmem>>, %arg1: memref<20x128xf32, #tpu.memory_space<vmem>>, %arg2: memref<1x128xf32, #tpu.memory_space<vmem>>, %arg3: memref<8x128xf32, #tpu.memory_space<vmem>>) attributes {dimension_semantics = [], scalar_prefetch = 0 : i64, scratch_operands = 0 : i64, tpu.core_type = #tpu.core_type<tc>} {
    %c0 = arith.constant 0 : index
    %c0_0 = arith.constant 0 : index
    %0 = vector.load %arg0[%c0, %c0_0] : memref<8x20xf32, #tpu.memory_space<vmem>>, vector<8x20xf32>
    %c0_1 = arith.constant 0 : index
    %c0_2 = arith.constant 0 : index
    %1 = vector.load %arg1[%c0_1, %c0_2] : memref<20x128xf32, #tpu.memory_space<vmem>>, vector<20x128xf32>
    %cst = arith.constant dense<0.000000e+00> : vector<8x128xf32>
    %2 = tpu.matmul %0, %1, %cst {dimension_numbers = #tpu.dot_dimension_numbers<[1], [0], [0], [1], [0, 0, 1, 1], [], []>} : vector<8x20xf32>, vector<20x128xf32>, vector<8x128xf32> -> vector<8x128xf32>
    %c0_3 = arith.constant 0 : index
    %c0_4 = arith.constant 0 : index
    %3 = vector.load %arg2[%c0_3, %c0_4] : memref<1x128xf32, #tpu.memory_space<vmem>>, vector<1x128xf32>
    %4 = vector.broadcast %3 : vector<1x128xf32> to vector<8x128xf32>
    %5 = arith.addf %2, %4 : vector<8x128xf32>
    %c0_5 = arith.constant 0 : index
    %c0_6 = arith.constant 0 : index
    %6 = vector.load %arg3[%c0_5, %c0_6] : memref<8x128xf32, #tpu.memory_space<vmem>>, vector<8x128xf32>
    tpu.vector_store %arg3[%c0_5, %c0_6], %5 {strides = array<i32>} : memref<8x128xf32, #tpu.memory_space<vmem>>, vector<8x128xf32>,
    return
  }
}

</mosaic_0001>

<llo_original>
// kernel: tpu_custom_call.1
$region0: #{tpu_custom_call.1}
  #allocation0 [shape = 'u32[]', space=smem, size = 0x4, offset = 0x4, fixed_abs, tag = 'smem constant byte address 0x4 - core index']
  #allocation1 [shape = 'u32[144,128]{1,0:T(1,128)}', space=vmem, size = 0x12000, scoped, tag = 'internal scratch']
  %s0 = inlined_call_operand.hbm [shape: f32[8,20], index: 0, kind: input, shape index: {}]
  %s1 = inlined_call_operand.hbm [shape: f32[20,128], index: 1, kind: input, shape index: {}]
  %s2 = inlined_call_operand.vmem [shape: f32[1,128], index: 2, kind: input, shape index: {}]
  %s3 = inlined_call_operand.hbm [shape: f32[8,128], index: 3, kind: output, shape index: {}]
  %s4 = sld [smem:[#allocation0]]
  $region30: #{tpu_custom_call.1} parent=0
    _
  %s6 = ssub.s32 1, %s4
  %s7 = scalar_select 0, %s6, %s4
  $region1: #{tpu_custom_call.1} parent=0
    #allocation2 [shape = 'u8[4096]{0}', space=vmem, size = 0x1000, scoped, tag = 'input window, operand 0, single buffered']
    #allocation3 [shape = 's32[1]{0}', space=sflag, size = 0x4, scoped, tag = 'scoped memory for tpu_custom_call.1']
    #allocation4 [shape = 's32[1]{0}', space=sflag, size = 0x4, scoped, tag = 'scoped memory for tpu_custom_call.1']
    #allocation5 [shape = 'u8[12288]{0}', space=vmem, size = 0x3000, scoped, tag = 'input window, operand 1, single buffered']
    #allocation6 [shape = 's32[1]{0}', space=sflag, size = 0x4, scoped, tag = 'scoped memory for tpu_custom_call.1']
    #allocation7 [shape = 'u8[4096]{0}', space=vmem, size = 0x1000, scoped, tag = 'output window, operand 0, single buffered']
    %8 = vsyncpa [#allocation3], 0
    %9 = vsyncpa [#allocation6], 0
    %10 = vsyncpa [#allocation4], 0
    // Predicated region
    $region2: #{tpu_custom_call.1} parent=1 // pred_check
      _
    $region3: #{tpu_custom_call.1} parent=1 // pred_check_branch
      %12 = sbr.rel (0) target = $region5
    $region4: #{tpu_custom_call.1} parent=1 // pred_region
      %s14 = ssub.s32 128, 128
      %15 = vsyncadd [#allocation3], %s14
      %s17 = sshll.u32 [#allocation2], 4
      %s18 = int_to_ptr.vmem [resolvable:$true] %s17
      %20 = dma.hbm_to_vmem [thread:$0]  %s0, 128, %s18, [#allocation3]
    $region5: #{tpu_custom_call.1} parent=1 // pred_fallthru
      _
    // Predicated region
    $region6: #{tpu_custom_call.1} parent=1 // pred_check
      _
    $region7: #{tpu_custom_call.1} parent=1 // pred_check_branch
      %22 = sbr.rel (0) target = $region9
    $region8: #{tpu_custom_call.1} parent=1 // pred_region
      %s24 = ssub.s32 384, 384
      %25 = vsyncadd [#allocation6], %s24
      %s26 = sshll.u32 [#allocation5], 4
      %s27 = int_to_ptr.vmem [resolvable:$true] %s26
      %32 = dma.hbm_to_vmem [thread:$0]  %s1, 384, %s27, [#allocation6], 128, 128, 8
    $region9: #{tpu_custom_call.1} parent=1 // pred_fallthru
      _
    // Predicated region
    $region10: #{tpu_custom_call.1} parent=1 // pred_check
      _
    $region11: #{tpu_custom_call.1} parent=1 // pred_check_branch
      %34 = sbr.rel (0) target = $region13
    $region12: #{tpu_custom_call.1} parent=1 // pred_region
      _
    $region13: #{tpu_custom_call.1} parent=1 // pred_fallthru
      _
    // Predicated region
    $region14: #{tpu_custom_call.1} parent=1 // pred_check
      _
    $region15: #{tpu_custom_call.1} parent=1 // pred_check_branch
      %36 = sbr.rel (0) target = $region17
    $region16: #{tpu_custom_call.1} parent=1 // pred_region
      %37 = dma.done [#allocation3], 128
    $region17: #{tpu_custom_call.1} parent=1 // pred_fallthru
      _
    // Predicated region
    $region18: #{tpu_custom_call.1} parent=1 // pred_check
      _
    $region19: #{tpu_custom_call.1} parent=1 // pred_check_branch
      %39 = sbr.rel (0) target = $region21
    $region20: #{tpu_custom_call.1} parent=1 // pred_region
      %40 = dma.done [#allocation6], 384
    $region21: #{tpu_custom_call.1} parent=1 // pred_fallthru
      _
    %v41 = vld [vmem:[#allocation2] sm:$0xff]
    %v42 = vld [vmem:[#allocation5] sm:$0xff]
    %v43 = vld [vmem:[#allocation5 + $0x8] sm:$0xff]
    %v44 = vld [vmem:[#allocation5 + $0x10] sm:$0xf]
    %v45 = vld [vmem:[%s2] sm:$0x1]
    %v47 = vlaneseq
    %v48 = vshrl.u32 %v47, 7
    %v49 = vsub.s32 0, %v48
    %v50 = vrot.slane %v45, %v49
    %vm52 = vcmask 162816
    %v54 = vsel %vm52, %v41, 0
    %vm56 = vcmask 1043456
    %v58 = vsel %vm56, %v44, 0
    %60 = vmatprep.subr.mxu0 0.0
    %61 = vmatpush1.msra.mxu0 %v42
    %62 = vmatprep.subr.mxu0 0.0
    %63 = vmatpush1.msra.mxu0 %v43
    %64 = vmatprep.subr.mxu0 0.0
    %65 = vmatpush1.msra.mxu0 %v58
    %66 = vmatprep.subr.mxu0 0.0
    %67 = vmatpush1.msra.mxu0 0.0
    %68 = vmatprep.subr.mxu0 0.0
    %69 = vmatpush1.msra.mxu0 0.0
    %70 = vmatprep.subr.mxu0 0.0
    %71 = vmatpush1.msra.mxu0 0.0
    %72 = vmatprep.subr.mxu0 0.0
    %73 = vmatpush1.msra.mxu0 0.0
    %74 = vmatprep.subr.mxu0 0.0
    %75 = vmatpush1.msra.mxu0 0.0
    %76 = vmatprep.subr.mxu0 0.0
    %77 = vmatpush1.msra.mxu0 0.0
    %78 = vmatprep.subr.mxu0 0.0
    %79 = vmatpush1.msra.mxu0 0.0
    %80 = vmatprep.subr.mxu0 0.0
    %81 = vmatpush1.msra.mxu0 0.0
    %82 = vmatprep.subr.mxu0 0.0
    %83 = vmatpush1.msra.mxu0 0.0
    %84 = vmatprep.subr.mxu0 0.0
    %85 = vmatpush1.msra.mxu0 0.0
    %86 = vmatprep.subr.mxu0 0.0
    %87 = vmatpush1.msra.mxu0 0.0
    %88 = vmatprep.subr.mxu0 0.0
    %89 = vmatpush1.msra.mxu0 0.0
    %90 = vmatprep.subr.mxu0 0.0
    %91 = vmatpush1.msra.mxu0 0.0
    %92 = vmatprep.subr.mxu0 0.0
    %93 = vmatpush1.msra.mxu0 0.0
    %94 = vmatprep.subr.mxu0 0.0
    %95 = vmatpush1.msra.mxu0 0.0
    %96 = vmatprep.subr.mxu0 0.0
    %97 = vmatpush1.msra.mxu0 0.0
    %98 = vmatprep.subr.mxu0 0.0
    %99 = vmatpush1.msra.mxu0 0.0
    %100 = vmatprep.subr.mxu0 0.0
    %101 = vmatpush1.msra.mxu0 0.0
    %102 = vmatprep.subr.mxu0 0.0
    %103 = vmatpush1.msra.mxu0 0.0
    %104 = vmatprep.subr.mxu0 0.0
    %105 = vmatpush1.msra.mxu0 0.0
    %106 = vmatprep.subr.mxu0 0.0
    %107 = vmatpush1.msra.mxu0 0.0
    %108 = vmatprep.subr.mxu0 0.0
    %109 = vmatpush1.msra.mxu0 0.0
    %110 = vmatprep.subr.mxu0 0.0
    %111 = vmatpush1.msra.mxu0 0.0
    %112 = vmatprep.subr.mxu0 0.0
    %113 = vmatpush1.msra.mxu0 0.0
    %114 = vmatprep.subr.mxu0 0.0
    %115 = vmatpush1.msra.mxu0 0.0
    %116 = vmatprep.subr.mxu0 0.0
    %117 = vmatpush1.msra.mxu0 0.0
    %118 = vmatprep.subr.mxu0 0.0
    %119 = vmatpush1.msra.mxu0 0.0
    %120 = vmatprep.subr.mxu0 0.0
    %121 = vmatpush1.msra.mxu0 0.0
    %122 = vmatprep.subr.mxu0 0.0
    %123 = vmatpush1.msra.mxu0 0.0
    %124 = vmatprep.mubr.f32.mxu0 0.0
    %125 = vmatmul.mubr.f32.gmra.mrb[0].mxu0 %v54
    %v126 = vpop.f32.mrb[0].mxu0
    %v127 = vadd.f32 %v50, %v126
    %v128 = vpop.f32.mrb[0].mxu0
    %129 = vdwg.mxu0
    %130 = vst [vmem:[#allocation7] sm:$0xff] %v127
    // Predicated region
    $region22: #{tpu_custom_call.1} parent=1 // pred_check
      _
    $region23: #{tpu_custom_call.1} parent=1 // pred_check_branch
      %132 = sbr.rel (0) target = $region25
    $region24: #{tpu_custom_call.1} parent=1 // pred_region
      %s134 = ssub.s32 128, 128
      %135 = vsyncadd [#allocation4], %s134
      %s137 = sshll.u32 [#allocation7], 4
      %s138 = int_to_ptr.vmem [resolvable:$true] %s137
      %140 = dma.vmem_to_hbm [thread:$0]  %s138, 128, %s3, [#allocation4]
    $region25: #{tpu_custom_call.1} parent=1 // pred_fallthru
      _
    // Predicated region
    $region26: #{tpu_custom_call.1} parent=1 // pred_check
      _
    $region27: #{tpu_custom_call.1} parent=1 // pred_check_branch
      %142 = sbr.rel (0) target = $region29
    $region28: #{tpu_custom_call.1} parent=1 // pred_region
      %143 = dma.done [#allocation4], 128
    $region29: #{tpu_custom_call.1} parent=1 // pred_fallthru
      _
    %144 = vsyncpa [#allocation3], 1
    %145 = vsyncpa [#allocation6], 1
    %146 = vsyncpa [#allocation4], 1

</llo_original>
